<compile_context>
chip_gen: v7x
topology: tpu7x:2x2x1
jax: 0.10.0
libtpu: 0.0.40
codegen_flags: <defaults>
</compile_context>

<pallas_src>
import math
import numpy as np
import jax
import jax.numpy as jnp
from jax import lax
from jax.experimental import pallas as pl
from jax.experimental.pallas import tpu as pltpu

_SQRT_2PI = math.sqrt(2.0 * math.pi)


def _softplus(x):
    # PyTorch nn.Softplus(beta=1, threshold=20)
    return jnp.where(x > 20.0, x, jnp.log1p(jnp.exp(jnp.minimum(x, 20.0))))


def _erf(x):
    # Abramowitz & Stegun 7.1.26 rational approximation, |err| < 1.5e-7.
    # Divide replaced by EUP approx reciprocal (frees VALU slots on the hot tail).
    # TODO(synk): switch to lax.erf if/when Mosaic grows a lowering for erf_p.
    a1, a2, a3, a4, a5 = 0.254829592, -0.284496736, 1.421413741, -1.453152027, 1.061405429
    p = 0.3275911
    sign = jnp.where(x < 0.0, -1.0, 1.0)
    ax = jnp.abs(x)
    t = pl.reciprocal(1.0 + p * ax, approx=True)
    poly = ((((a5 * t + a4) * t + a3) * t + a2) * t + a1) * t
    return sign * (1.0 - poly * jnp.exp(-ax * ax))


def traj_kernel(xt_ref, logt_ref,
                wb1_ref, bb1_ref, wb2_ref, bb2_ref,
                wh1_ref, bh1_ref, wh2_ref, bh2_ref, wh3_ref, bh3_ref,
                out_ref):
    # All activations are (features, TB): batch on the lane axis.
    xt = xt_ref[...]                                            # (D, TB)

    # F.normalize(p=2, dim=1, eps=1e-12): rsqrt of per-column sum-of-squares (EUP).
    sumsq = jnp.sum(xt * xt, axis=0, keepdims=True)             # (1, TB)
    xn = xt * lax.rsqrt(jnp.maximum(sumsq, 1e-24))

    # mlp_base: Linear(D,64) -> ReLU -> Linear(64,32)   (weights in PyTorch (out,in) layout)
    h = jnp.maximum(
        jnp.dot(wb1_ref[...], xn, preferred_element_type=jnp.float32) + bb1_ref[...], 0.0)
    base = jnp.dot(wb2_ref[...], h, preferred_element_type=jnp.float32) + bb2_ref[...]        # (32, TB)

    # Fused theta1/theta2/xi heads: concat layer-1, block-diagonal layers 2/3.
    h1 = jnp.maximum(
        jnp.dot(wh1_ref[...], base, preferred_element_type=jnp.float32) + bh1_ref[...], 0.0)  # (72, TB)
    h2 = jnp.maximum(
        jnp.dot(wh2_ref[...], h1, preferred_element_type=jnp.float32) + bh2_ref[...], 0.0)    # (24, TB)
    p3 = jnp.dot(wh3_ref[...], h2, preferred_element_type=jnp.float32) + bh3_ref[...]         # (8, TB)

    theta1 = jnp.maximum(p3[0:1, :], 0.0)                       # (1, TB)  ReLU head
    theta2 = jnp.maximum(p3[1:2, :], 0.0)                       # (1, TB)  ReLU head
    xi = _softplus(p3[2:3, :])                                  # (1, TB)  Softplus head
    # mlp_theta3 / logistic_general are config-dead for ts_func_type='log', predict_year=0.

    # cdf_dist: theta1 * (1 + erf((log t - theta2) / (sqrt(2*pi) * xi)))
    inv = pl.reciprocal(_SQRT_2PI * xi, approx=True)            # (1, TB), EUP, B reciprocals
    arg = (logt_ref[...] - theta2) * inv                        # (T, TB)  lane-dense
    out_ref[...] = theta1 * (1.0 + _erf(arg))                   # (T, TB)  unmasked vst


def traj_forward(x, packed, predict_seq, *, tb=512):
    B, D = x.shape
    T = predict_seq
    # Batch tile on the lane axis: a multiple of 128, capped at `tb`.
    TB = tb if B >= tb else 128 * pl.cdiv(B, 128)
    nb = pl.cdiv(B, TB)
    Bp = nb * TB

    xt = jnp.pad(x.astype(jnp.float32), ((0, Bp - B), (0, 0))).T       # (D, Bp), layout plumbing
    logt = jnp.log(jnp.arange(1, T + 1, dtype=jnp.float32)).reshape(T, 1)

    resident = lambda a: pl.BlockSpec(a.shape, lambda i: (0, 0))       # fetched once, stays in VMEM

    out_t = pl.pallas_call(
        traj_kernel,
        grid=(nb,),
        in_specs=[pl.BlockSpec((D, TB), lambda i: (0, i)),             # x^T tile, batch on lanes
                  resident(logt)]
                 + [resident(p) for p in packed],
        out_specs=pl.BlockSpec((T, TB), lambda i: (0, i)),             # lane-dense output
        out_shape=jax.ShapeDtypeStruct((T, Bp), jnp.float32),
        compiler_params=pltpu.CompilerParams(
            dimension_semantics=("parallel",)),                        # 2x TC sharding on v7x
    )(xt, logt, *packed)

    return out_t[:, :B].T                                              # (B, T)


def init_params(key, imputed_size):
    """Raw per-layer params, PyTorch layout: weight (out, in), bias (out,).
    xavier_uniform weights, PyTorch-default uniform biases (deterministic synthetic init)."""
    def linear(k, fan_in, fan_out):
        kw, kb = jax.random.split(k)
        limit = math.sqrt(6.0 / (fan_in + fan_out))
        w = jax.random.uniform(kw, (fan_out, fan_in), jnp.float32, -limit, limit)
        bound = 1.0 / math.sqrt(fan_in)
        b = jax.random.uniform(kb, (fan_out,), jnp.float32, -bound, bound)
        return w, b

    keys = jax.random.split(key, 11)
    raw = {'base': [linear(keys[0], imputed_size, 64), linear(keys[1], 64, 32)]}
    for hi, name in enumerate(('theta1', 'theta2', 'xi')):
        raw[name] = [linear(keys[2 + 3 * hi], 32, 24),
                     linear(keys[3 + 3 * hi], 24, 8),
                     linear(keys[4 + 3 * hi], 8, 1)]
    return raw


def pack_params(raw):
    """Fuse the three heads into 3 matmuls (concat layer-1, block-diagonal layers 2/3)."""
    col = lambda b: b.reshape(-1, 1)
    (wb1, bb1), (wb2, bb2) = raw['base']
    heads = [raw['theta1'], raw['theta2'], raw['xi']]

    wh1 = jnp.concatenate([h[0][0] for h in heads], axis=0)                 # (72, 32)
    bh1 = jnp.concatenate([h[0][1] for h in heads], axis=0)                 # (72,)
    wh2 = jnp.zeros((24, 72), jnp.float32)
    bh2 = jnp.concatenate([h[1][1] for h in heads], axis=0)                 # (24,)
    wh3 = jnp.zeros((8, 24), jnp.float32)                                   # padded to 8 rows
    bh3 = jnp.zeros((8,), jnp.float32)
    for i, h in enumerate(heads):
        wh2 = wh2.at[8 * i:8 * (i + 1), 24 * i:24 * (i + 1)].set(h[1][0])   # (8, 24) block
        wh3 = wh3.at[i, 8 * i:8 * (i + 1)].set(h[2][0][0])                  # (1, 8) row
        bh3 = bh3.at[i].set(h[2][1][0])
    return (wb1, col(bb1), wb2, col(bb2), wh1, col(bh1), wh2, col(bh2), wh3, col(bh3))


def reference(x, raw, T):
    """Pure-JAX reference of the same forward (unfused heads, jax.scipy erf)."""
    import jax.scipy.special as jsp
    lin = lambda p, h: h @ p[0].T + p[1]
    norm = jnp.sqrt(jnp.sum(x * x, axis=1, keepdims=True))
    xn = x / jnp.maximum(norm, 1e-12)
    h = jnp.maximum(lin(raw['base'][0], xn), 0.0)
    base = lin(raw['base'][1], h)

    def head(layers):
        h1 = jnp.maximum(lin(layers[0], base), 0.0)
        h2 = jnp.maximum(lin(layers[1], h1), 0.0)
        return lin(layers[2], h2)

    theta1 = jnp.maximum(head(raw['theta1']), 0.0)
    theta2 = jnp.maximum(head(raw['theta2']), 0.0)
    xi = jax.nn.softplus(head(raw['xi']))
    logt = jnp.log(jnp.arange(1, T + 1, dtype=jnp.float32)).reshape(1, T)
    return theta1 * (1.0 + jsp.erf((logt - theta2) / (_SQRT_2PI * xi)))


if __name__ == "__main__":
    B, D, T = 2, 32, 8           # batch, imputed_size, predict_seq
    key = jax.random.PRNGKey(0)
    kx, kp = jax.random.split(key)
    x = jax.random.normal(kx, (B, D), jnp.float32)
    raw = init_params(kp, D)
    packed = pack_params(raw)

    out = traj_forward(x, packed, T)
    out = jax.block_until_ready(out)

    ref = reference(x, raw, T)
    np.testing.assert_allclose(np.asarray(out), np.asarray(ref), rtol=2e-3, atol=1e-3)
    assert out.shape == (B, T)
    print("KERNEL_OK")
</pallas_src>

<mosaic_0001>
module attributes {stable_mosaic.version = 11 : i64} {
  func.func @traj_kernel(%arg0: i32, %arg1: memref<32x128xf32, #tpu.memory_space<vmem>>, %arg2: memref<8x1xf32, #tpu.memory_space<vmem>>, %arg3: memref<64x32xf32, #tpu.memory_space<vmem>>, %arg4: memref<64x1xf32, #tpu.memory_space<vmem>>, %arg5: memref<32x64xf32, #tpu.memory_space<vmem>>, %arg6: memref<32x1xf32, #tpu.memory_space<vmem>>, %arg7: memref<72x32xf32, #tpu.memory_space<vmem>>, %arg8: memref<72x1xf32, #tpu.memory_space<vmem>>, %arg9: memref<24x72xf32, #tpu.memory_space<vmem>>, %arg10: memref<24x1xf32, #tpu.memory_space<vmem>>, %arg11: memref<8x24xf32, #tpu.memory_space<vmem>>, %arg12: memref<8x1xf32, #tpu.memory_space<vmem>>, %arg13: memref<8x128xf32, #tpu.memory_space<vmem>>) attributes {dimension_semantics = [#tpu.dimension_semantics<parallel>], iteration_bounds = array<i64: 1>, scalar_prefetch = 0 : i64, scratch_operands = 0 : i64, tpu.core_type = #tpu.core_type<tc>, window_params = [{transform_indices = @transform_0, window_bounds = array<i64: 32, 128>}, {pipeline_mode = #tpu.pipeline_mode<synchronous>, transform_indices = @transform_1, window_bounds = array<i64: 8, 1>}, {pipeline_mode = #tpu.pipeline_mode<synchronous>, transform_indices = @transform_2, window_bounds = array<i64: 64, 32>}, {pipeline_mode = #tpu.pipeline_mode<synchronous>, transform_indices = @transform_3, window_bounds = array<i64: 64, 1>}, {pipeline_mode = #tpu.pipeline_mode<synchronous>, transform_indices = @transform_4, window_bounds = array<i64: 32, 64>}, {pipeline_mode = #tpu.pipeline_mode<synchronous>, transform_indices = @transform_5, window_bounds = array<i64: 32, 1>}, {pipeline_mode = #tpu.pipeline_mode<synchronous>, transform_indices = @transform_6, window_bounds = array<i64: 72, 32>}, {pipeline_mode = #tpu.pipeline_mode<synchronous>, transform_indices = @transform_7, window_bounds = array<i64: 72, 1>}, {pipeline_mode = #tpu.pipeline_mode<synchronous>, transform_indices = @transform_8, window_bounds = array<i64: 24, 72>}, {pipeline_mode = #tpu.pipeline_mode<synchronous>, transform_indices = @transform_9, window_bounds = array<i64: 24, 1>}, {pipeline_mode = #tpu.pipeline_mode<synchronous>, transform_indices = @transform_10, window_bounds = array<i64: 8, 24>}, {pipeline_mode = #tpu.pipeline_mode<synchronous>, transform_indices = @transform_11, window_bounds = array<i64: 8, 1>}, {transform_indices = @transform_12, window_bounds = array<i64: 8, 128>}]} {
    %c0 = arith.constant 0 : index
    %c0_0 = arith.constant 0 : index
    %0 = vector.load %arg1[%c0, %c0_0] : memref<32x128xf32, #tpu.memory_space<vmem>>, vector<32x128xf32>
    %1 = arith.mulf %0, %0 : vector<32x128xf32>
    %cst = arith.constant dense<0.000000e+00> : vector<128xf32>
    %2 = vector.multi_reduction <add>, %1, %cst [0] : vector<32x128xf32> to vector<128xf32>
    %3 = vector.shape_cast %2 : vector<128xf32> to vector<1x128xf32>
    %cst_1 = arith.constant 1.000000e-24 : f32
    %4 = vector.broadcast %cst_1 : f32 to vector<1x128xf32>
    %5 = arith.maximumf %3, %4 : vector<1x128xf32>
    %6 = math.rsqrt %5 : vector<1x128xf32>
    %7 = vector.broadcast %6 : vector<1x128xf32> to vector<32x128xf32>
    %8 = arith.mulf %0, %7 : vector<32x128xf32>
    %c0_2 = arith.constant 0 : index
    %c0_3 = arith.constant 0 : index
    %9 = vector.load %arg3[%c0_2, %c0_3] : memref<64x32xf32, #tpu.memory_space<vmem>>, vector<64x32xf32>
    %cst_4 = arith.constant dense<0.000000e+00> : vector<64x128xf32>
    %10 = tpu.matmul %9, %8, %cst_4 {dimension_numbers = #tpu.dot_dimension_numbers<[1], [0], [0], [1], [0, 0, 1, 1], [], []>} : vector<64x32xf32>, vector<32x128xf32>, vector<64x128xf32> -> vector<64x128xf32>
    %c0_5 = arith.constant 0 : index
    %c0_6 = arith.constant 0 : index
    %11 = vector.load %arg4[%c0_5, %c0_6] : memref<64x1xf32, #tpu.memory_space<vmem>>, vector<64x1xf32>
    %12 = vector.broadcast %11 : vector<64x1xf32> to vector<64x128xf32>
    %13 = arith.addf %10, %12 : vector<64x128xf32>
    %cst_7 = arith.constant 0.000000e+00 : f32
    %14 = vector.broadcast %cst_7 : f32 to vector<64x128xf32>
    %15 = arith.maximumf %13, %14 : vector<64x128xf32>
    %c0_8 = arith.constant 0 : index
    %c0_9 = arith.constant 0 : index
    %16 = vector.load %arg5[%c0_8, %c0_9] : memref<32x64xf32, #tpu.memory_space<vmem>>, vector<32x64xf32>
    %cst_10 = arith.constant dense<0.000000e+00> : vector<32x128xf32>
    %17 = tpu.matmul %16, %15, %cst_10 {dimension_numbers = #tpu.dot_dimension_numbers<[1], [0], [0], [1], [0, 0, 1, 1], [], []>} : vector<32x64xf32>, vector<64x128xf32>, vector<32x128xf32> -> vector<32x128xf32>
    %c0_11 = arith.constant 0 : index
    %c0_12 = arith.constant 0 : index
    %18 = vector.load %arg6[%c0_11, %c0_12] : memref<32x1xf32, #tpu.memory_space<vmem>>, vector<32x1xf32>
    %19 = vector.broadcast %18 : vector<32x1xf32> to vector<32x128xf32>
    %20 = arith.addf %17, %19 : vector<32x128xf32>
    %c0_13 = arith.constant 0 : index
    %c0_14 = arith.constant 0 : index
    %21 = vector.load %arg7[%c0_13, %c0_14] : memref<72x32xf32, #tpu.memory_space<vmem>>, vector<72x32xf32>
    %cst_15 = arith.constant dense<0.000000e+00> : vector<72x128xf32>
    %22 = tpu.matmul %21, %20, %cst_15 {dimension_numbers = #tpu.dot_dimension_numbers<[1], [0], [0], [1], [0, 0, 1, 1], [], []>} : vector<72x32xf32>, vector<32x128xf32>, vector<72x128xf32> -> vector<72x128xf32>
    %c0_16 = arith.constant 0 : index
    %c0_17 = arith.constant 0 : index
    %23 = vector.load %arg8[%c0_16, %c0_17] : memref<72x1xf32, #tpu.memory_space<vmem>>, vector<72x1xf32>
    %24 = vector.broadcast %23 : vector<72x1xf32> to vector<72x128xf32>
    %25 = arith.addf %22, %24 : vector<72x128xf32>
    %cst_18 = arith.constant 0.000000e+00 : f32
    %26 = vector.broadcast %cst_18 : f32 to vector<72x128xf32>
    %27 = arith.maximumf %25, %26 : vector<72x128xf32>
    %c0_19 = arith.constant 0 : index
    %c0_20 = arith.constant 0 : index
    %28 = vector.load %arg9[%c0_19, %c0_20] : memref<24x72xf32, #tpu.memory_space<vmem>>, vector<24x72xf32>
    %cst_21 = arith.constant dense<0.000000e+00> : vector<24x128xf32>
    %29 = tpu.matmul %28, %27, %cst_21 {dimension_numbers = #tpu.dot_dimension_numbers<[1], [0], [0], [1], [0, 0, 1, 1], [], []>} : vector<24x72xf32>, vector<72x128xf32>, vector<24x128xf32> -> vector<24x128xf32>
    %c0_22 = arith.constant 0 : index
    %c0_23 = arith.constant 0 : index
    %30 = vector.load %arg10[%c0_22, %c0_23] : memref<24x1xf32, #tpu.memory_space<vmem>>, vector<24x1xf32>
    %31 = vector.broadcast %30 : vector<24x1xf32> to vector<24x128xf32>
    %32 = arith.addf %29, %31 : vector<24x128xf32>
    %cst_24 = arith.constant 0.000000e+00 : f32
    %33 = vector.broadcast %cst_24 : f32 to vector<24x128xf32>
    %34 = arith.maximumf %32, %33 : vector<24x128xf32>
    %c0_25 = arith.constant 0 : index
    %c0_26 = arith.constant 0 : index
    %35 = vector.load %arg11[%c0_25, %c0_26] : memref<8x24xf32, #tpu.memory_space<vmem>>, vector<8x24xf32>
    %cst_27 = arith.constant dense<0.000000e+00> : vector<8x128xf32>
    %36 = tpu.matmul %35, %34, %cst_27 {dimension_numbers = #tpu.dot_dimension_numbers<[1], [0], [0], [1], [0, 0, 1, 1], [], []>} : vector<8x24xf32>, vector<24x128xf32>, vector<8x128xf32> -> vector<8x128xf32>
    %c0_28 = arith.constant 0 : index
    %c0_29 = arith.constant 0 : index
    %37 = vector.load %arg12[%c0_28, %c0_29] : memref<8x1xf32, #tpu.memory_space<vmem>>, vector<8x1xf32>
    %38 = vector.broadcast %37 : vector<8x1xf32> to vector<8x128xf32>
    %39 = arith.addf %36, %38 : vector<8x128xf32>
    %40 = vector.extract_strided_slice %39 {offsets = [0, 0], sizes = [1, 128], strides = [1, 1]} : vector<8x128xf32> to vector<1x128xf32>
    %cst_30 = arith.constant 0.000000e+00 : f32
    %41 = vector.broadcast %cst_30 : f32 to vector<1x128xf32>
    %42 = arith.maximumf %40, %41 : vector<1x128xf32>
    %43 = vector.extract_strided_slice %39 {offsets = [1, 0], sizes = [1, 128], strides = [1, 1]} : vector<8x128xf32> to vector<1x128xf32>
    %cst_31 = arith.constant 0.000000e+00 : f32
    %44 = vector.broadcast %cst_31 : f32 to vector<1x128xf32>
    %45 = arith.maximumf %43, %44 : vector<1x128xf32>
    %46 = vector.extract_strided_slice %39 {offsets = [2, 0], sizes = [1, 128], strides = [1, 1]} : vector<8x128xf32> to vector<1x128xf32>
    %cst_32 = arith.constant 2.000000e+01 : f32
    %47 = vector.broadcast %cst_32 : f32 to vector<1x128xf32>
    %48 = arith.cmpf ogt, %46, %47 : vector<1x128xf32>
    %cst_33 = arith.constant 2.000000e+01 : f32
    %49 = vector.broadcast %cst_33 : f32 to vector<1x128xf32>
    %50 = arith.minimumf %46, %49 : vector<1x128xf32>
    %51 = math.exp %50 : vector<1x128xf32>
    %52 = math.log1p %51 : vector<1x128xf32>
    %53 = arith.select %48, %46, %52 : vector<1x128xi1>, vector<1x128xf32>
    %cst_34 = arith.constant 2.50662827 : f32
    %54 = vector.broadcast %cst_34 : f32 to vector<1x128xf32>
    %55 = arith.mulf %54, %53 : vector<1x128xf32>
    %56 = tpu.reciprocal %55 {approx = true} : vector<1x128xf32> -> vector<1x128xf32>
    %c0_35 = arith.constant 0 : index
    %c0_36 = arith.constant 0 : index
    %57 = vector.load %arg2[%c0_35, %c0_36] : memref<8x1xf32, #tpu.memory_space<vmem>>, vector<8x1xf32>
    %58 = vector.broadcast %57 : vector<8x1xf32> to vector<8x128xf32>
    %59 = vector.broadcast %45 : vector<1x128xf32> to vector<8x128xf32>
    %60 = arith.subf %58, %59 : vector<8x128xf32>
    %61 = vector.broadcast %56 : vector<1x128xf32> to vector<8x128xf32>
    %62 = arith.mulf %60, %61 : vector<8x128xf32>
    %cst_37 = arith.constant 0.000000e+00 : f32
    %63 = vector.broadcast %cst_37 : f32 to vector<8x128xf32>
    %64 = arith.cmpf olt, %62, %63 : vector<8x128xf32>
    %cst_38 = arith.constant -1.000000e+00 : f32
    %cst_39 = arith.constant 1.000000e+00 : f32
    %65 = vector.broadcast %cst_38 : f32 to vector<8x128xf32>
    %66 = vector.broadcast %cst_39 : f32 to vector<8x128xf32>
    %67 = arith.select %64, %65, %66 : vector<8x128xi1>, vector<8x128xf32>
    %68 = math.absf %62 : vector<8x128xf32>
    %cst_40 = arith.constant 0.327591091 : f32
    %69 = vector.broadcast %cst_40 : f32 to vector<8x128xf32>
    %70 = arith.mulf %69, %68 : vector<8x128xf32>
    %cst_41 = arith.constant 1.000000e+00 : f32
    %71 = vector.broadcast %cst_41 : f32 to vector<8x128xf32>
    %72 = arith.addf %71, %70 : vector<8x128xf32>
    %73 = tpu.reciprocal %72 {approx = true} : vector<8x128xf32> -> vector<8x128xf32>
    %cst_42 = arith.constant 1.06140542 : f32
    %74 = vector.broadcast %cst_42 : f32 to vector<8x128xf32>
    %75 = arith.mulf %74, %73 : vector<8x128xf32>
    %cst_43 = arith.constant -1.45315206 : f32
    %76 = vector.broadcast %cst_43 : f32 to vector<8x128xf32>
    %77 = arith.addf %75, %76 : vector<8x128xf32>
    %78 = arith.mulf %77, %73 : vector<8x128xf32>
    %cst_44 = arith.constant 1.42141378 : f32
    %79 = vector.broadcast %cst_44 : f32 to vector<8x128xf32>
    %80 = arith.addf %78, %79 : vector<8x128xf32>
    %81 = arith.mulf %80, %73 : vector<8x128xf32>
    %cst_45 = arith.constant -0.284496725 : f32
    %82 = vector.broadcast %cst_45 : f32 to vector<8x128xf32>
    %83 = arith.addf %81, %82 : vector<8x128xf32>
    %84 = arith.mulf %83, %73 : vector<8x128xf32>
    %cst_46 = arith.constant 0.254829586 : f32
    %85 = vector.broadcast %cst_46 : f32 to vector<8x128xf32>
    %86 = arith.addf %84, %85 : vector<8x128xf32>
    %87 = arith.mulf %86, %73 : vector<8x128xf32>
    %cst_47 = arith.constant 0.000000e+00 : f32
    %88 = vector.broadcast %cst_47 : f32 to vector<8x128xf32>
    %89 = arith.subf %88, %68 : vector<8x128xf32>
    %90 = arith.mulf %89, %68 : vector<8x128xf32>
    %91 = math.exp %90 : vector<8x128xf32>
    %92 = arith.mulf %87, %91 : vector<8x128xf32>
    %cst_48 = arith.constant 1.000000e+00 : f32
    %93 = vector.broadcast %cst_48 : f32 to vector<8x128xf32>
    %94 = arith.subf %93, %92 : vector<8x128xf32>
    %95 = arith.mulf %67, %94 : vector<8x128xf32>
    %cst_49 = arith.constant 1.000000e+00 : f32
    %96 = vector.broadcast %cst_49 : f32 to vector<8x128xf32>
    %97 = arith.addf %96, %95 : vector<8x128xf32>
    %98 = vector.broadcast %42 : vector<1x128xf32> to vector<8x128xf32>
    %99 = arith.mulf %98, %97 : vector<8x128xf32>
    %c0_50 = arith.constant 0 : index
    %c0_51 = arith.constant 0 : index
    %100 = vector.load %arg13[%c0_50, %c0_51] : memref<8x128xf32, #tpu.memory_space<vmem>>, vector<8x128xf32>
    tpu.vector_store %arg13[%c0_50, %c0_51], %99 {strides = array<i32>} : memref<8x128xf32, #tpu.memory_space<vmem>>, vector<8x128xf32>,
    return
  }
  func.func @transform_0(%arg0: i32) -> (i32, i32) {
    %c0_i32 = arith.constant 0 : i32
    %c0_i32_0 = arith.constant 0 : i32
    return %c0_i32, %arg0 : i32, i32
  }
  func.func @transform_1(%arg0: i32) -> (i32, i32) {
    %c0_i32 = arith.constant 0 : i32
    %c0_i32_0 = arith.constant 0 : i32
    %c0_i32_1 = arith.constant 0 : i32
    return %c0_i32, %c0_i32_0 : i32, i32
  }
  func.func @transform_2(%arg0: i32) -> (i32, i32) {
    %c0_i32 = arith.constant 0 : i32
    %c0_i32_0 = arith.constant 0 : i32
    %c0_i32_1 = arith.constant 0 : i32
    return %c0_i32, %c0_i32_0 : i32, i32
  }
  func.func @transform_3(%arg0: i32) -> (i32, i32) {
    %c0_i32 = arith.constant 0 : i32
    %c0_i32_0 = arith.constant 0 : i32
    %c0_i32_1 = arith.constant 0 : i32
    return %c0_i32, %c0_i32_0 : i32, i32
  }
  func.func @transform_4(%arg0: i32) -> (i32, i32) {
    %c0_i32 = arith.constant 0 : i32
    %c0_i32_0 = arith.constant 0 : i32
    %c0_i32_1 = arith.constant 0 : i32
    return %c0_i32, %c0_i32_0 : i32, i32
  }
  func.func @transform_5(%arg0: i32) -> (i32, i32) {
    %c0_i32 = arith.constant 0 : i32
    %c0_i32_0 = arith.constant 0 : i32
    %c0_i32_1 = arith.constant 0 : i32
    return %c0_i32, %c0_i32_0 : i32, i32
  }
  func.func @transform_6(%arg0: i32) -> (i32, i32) {
    %c0_i32 = arith.constant 0 : i32
    %c0_i32_0 = arith.constant 0 : i32
    %c0_i32_1 = arith.constant 0 : i32
    return %c0_i32, %c0_i32_0 : i32, i32
  }
  func.func @transform_7(%arg0: i32) -> (i32, i32) {
    %c0_i32 = arith.constant 0 : i32
    %c0_i32_0 = arith.constant 0 : i32
    %c0_i32_1 = arith.constant 0 : i32
    return %c0_i32, %c0_i32_0 : i32, i32
  }
  func.func @transform_8(%arg0: i32) -> (i32, i32) {
    %c0_i32 = arith.constant 0 : i32
    %c0_i32_0 = arith.constant 0 : i32
    %c0_i32_1 = arith.constant 0 : i32
    return %c0_i32, %c0_i32_0 : i32, i32
  }
  func.func @transform_9(%arg0: i32) -> (i32, i32) {
    %c0_i32 = arith.constant 0 : i32
    %c0_i32_0 = arith.constant 0 : i32
    %c0_i32_1 = arith.constant 0 : i32
    return %c0_i32, %c0_i32_0 : i32, i32
  }
  func.func @transform_10(%arg0: i32) -> (i32, i32) {
    %c0_i32 = arith.constant 0 : i32
    %c0_i32_0 = arith.constant 0 : i32
    %c0_i32_1 = arith.constant 0 : i32
    return %c0_i32, %c0_i32_0 : i32, i32
  }
  func.func @transform_11(%arg0: i32) -> (i32, i32) {
    %c0_i32 = arith.constant 0 : i32
    %c0_i32_0 = arith.constant 0 : i32
    %c0_i32_1 = arith.constant 0 : i32
    return %c0_i32, %c0_i32_0 : i32, i32
  }
  func.func @transform_12(%arg0: i32) -> (i32, i32) {
    %c0_i32 = arith.constant 0 : i32
    %c0_i32_0 = arith.constant 0 : i32
    return %c0_i32, %arg0 : i32, i32
  }
}

</mosaic_0001>

<llo_original>
// kernel: tpu_custom_call.1
$region0: #{tpu_custom_call.1}
  #allocation0 [shape = 'u32[]', space=smem, size = 0x4, offset = 0x4, fixed_abs, tag = 'smem constant byte address 0x4 - core index']
  #allocation1 [shape = 'u32[144,128]{1,0:T(1,128)}', space=vmem, size = 0x12000, scoped, tag = 'internal scratch']
  %s0 = inlined_call_operand.vmem [shape: f32[32,128], index: 0, kind: input, shape index: {}]
  %s1 = inlined_call_operand.vmem [shape: f32[8,1], index: 1, kind: input, shape index: {}]
  %s2 = inlined_call_operand.vmem [shape: f32[64,32], index: 2, kind: input, shape index: {}]
  %s3 = inlined_call_operand.vmem [shape: f32[64,1], index: 3, kind: input, shape index: {}]
  %s4 = inlined_call_operand.vmem [shape: f32[32,64], index: 4, kind: input, shape index: {}]
  %s5 = inlined_call_operand.vmem [shape: f32[32,1], index: 5, kind: input, shape index: {}]
  %s6 = inlined_call_operand.vmem [shape: f32[72,32], index: 6, kind: input, shape index: {}]
  %s7 = inlined_call_operand.vmem [shape: f32[72,1], index: 7, kind: input, shape index: {}]
  %s8 = inlined_call_operand.vmem [shape: f32[24,72], index: 8, kind: input, shape index: {}]
  %s9 = inlined_call_operand.vmem [shape: f32[24,1], index: 9, kind: input, shape index: {}]
  %s10 = inlined_call_operand.vmem [shape: f32[8,24], index: 10, kind: input, shape index: {}]
  %s11 = inlined_call_operand.vmem [shape: f32[8,1], index: 11, kind: input, shape index: {}]
  %s12 = inlined_call_operand.hbm [shape: f32[8,128], index: 12, kind: output, shape index: {}]
  %s13 = sld [smem:[#allocation0]]
  $region58: #{tpu_custom_call.1} parent=0
    _
  %s15 = ssub.s32 1, %s13
  %s16 = scalar_select 0, %s15, %s13
  $region1: #{tpu_custom_call.1} parent=0
    #allocation2 [shape = 'u8[4096]{0}', space=vmem, size = 0x1000, scoped, tag = 'output window, operand 0, single buffered']
    #allocation3 [shape = 's32[1]{0}', space=sflag, size = 0x4, scoped, tag = 'scoped memory for tpu_custom_call.1']
    %17 = vsyncpa [#allocation3], 0
    // Predicated region
    $region2: #{tpu_custom_call.1} parent=1 // pred_check
      _
    $region3: #{tpu_custom_call.1} parent=1 // pred_check_branch
      %19 = sbr.rel (0) target = $region5
    $region4: #{tpu_custom_call.1} parent=1 // pred_region
      _
    $region5: #{tpu_custom_call.1} parent=1 // pred_fallthru
      _
    // Predicated region
    $region6: #{tpu_custom_call.1} parent=1 // pred_check
      _
    $region7: #{tpu_custom_call.1} parent=1 // pred_check_branch
      %21 = sbr.rel (0) target = $region9
    $region8: #{tpu_custom_call.1} parent=1 // pred_region
      _
    $region9: #{tpu_custom_call.1} parent=1 // pred_fallthru
      _
    // Predicated region
    $region10: #{tpu_custom_call.1} parent=1 // pred_check
      _
    $region11: #{tpu_custom_call.1} parent=1 // pred_check_branch
      %23 = sbr.rel (0) target = $region13
    $region12: #{tpu_custom_call.1} parent=1 // pred_region
      _
    $region13: #{tpu_custom_call.1} parent=1 // pred_fallthru
      _
    // Predicated region
    $region14: #{tpu_custom_call.1} parent=1 // pred_check
      _
    $region15: #{tpu_custom_call.1} parent=1 // pred_check_branch
      %25 = sbr.rel (0) target = $region17
    $region16: #{tpu_custom_call.1} parent=1 // pred_region
      _
    $region17: #{tpu_custom_call.1} parent=1 // pred_fallthru
      _
    // Predicated region
    $region18: #{tpu_custom_call.1} parent=1 // pred_check
      _
    $region19: #{tpu_custom_call.1} parent=1 // pred_check_branch
      %27 = sbr.rel (0) target = $region21
    $region20: #{tpu_custom_call.1} parent=1 // pred_region
      _
    $region21: #{tpu_custom_call.1} parent=1 // pred_fallthru
      _
    // Predicated region
    $region22: #{tpu_custom_call.1} parent=1 // pred_check
      _
    $region23: #{tpu_custom_call.1} parent=1 // pred_check_branch
      %29 = sbr.rel (0) target = $region25
    $region24: #{tpu_custom_call.1} parent=1 // pred_region
      _
    $region25: #{tpu_custom_call.1} parent=1 // pred_fallthru
      _
    // Predicated region
    $region26: #{tpu_custom_call.1} parent=1 // pred_check
      _
    $region27: #{tpu_custom_call.1} parent=1 // pred_check_branch
      %31 = sbr.rel (0) target = $region29
    $region28: #{tpu_custom_call.1} parent=1 // pred_region
      _
    $region29: #{tpu_custom_call.1} parent=1 // pred_fallthru
      _
    // Predicated region
    $region30: #{tpu_custom_call.1} parent=1 // pred_check
      _
    $region31: #{tpu_custom_call.1} parent=1 // pred_check_branch
      %33 = sbr.rel (0) target = $region33
    $region32: #{tpu_custom_call.1} parent=1 // pred_region
      _
    $region33: #{tpu_custom_call.1} parent=1 // pred_fallthru
      _
    // Predicated region
    $region34: #{tpu_custom_call.1} parent=1 // pred_check
      _
    $region35: #{tpu_custom_call.1} parent=1 // pred_check_branch
      %35 = sbr.rel (0) target = $region37
    $region36: #{tpu_custom_call.1} parent=1 // pred_region
      _
    $region37: #{tpu_custom_call.1} parent=1 // pred_fallthru
      _
    // Predicated region
    $region38: #{tpu_custom_call.1} parent=1 // pred_check
      _
    $region39: #{tpu_custom_call.1} parent=1 // pred_check_branch
      %37 = sbr.rel (0) target = $region41
    $region40: #{tpu_custom_call.1} parent=1 // pred_region
      _
    $region41: #{tpu_custom_call.1} parent=1 // pred_fallthru
      _
    // Predicated region
    $region42: #{tpu_custom_call.1} parent=1 // pred_check
      _
    $region43: #{tpu_custom_call.1} parent=1 // pred_check_branch
      %39 = sbr.rel (0) target = $region45
    $region44: #{tpu_custom_call.1} parent=1 // pred_region
      _
    $region45: #{tpu_custom_call.1} parent=1 // pred_fallthru
      _
    // Predicated region
    $region46: #{tpu_custom_call.1} parent=1 // pred_check
      _
    $region47: #{tpu_custom_call.1} parent=1 // pred_check_branch
      %41 = sbr.rel (0) target = $region49
    $region48: #{tpu_custom_call.1} parent=1 // pred_region
      _
    $region49: #{tpu_custom_call.1} parent=1 // pred_fallthru
      _
    %v42 = vld [vmem:[%s0] sm:$0xff]
    %v43 = vld [vmem:[%s0 + $0x8] sm:$0xff]
    %v44 = vld [vmem:[%s0 + $0x10] sm:$0xff]
    %v45 = vld [vmem:[%s0 + $0x18] sm:$0xff]
    %v46 = vmul.f32 %v42, %v42
    %v47 = vmul.f32 %v43, %v43
    %v48 = vmul.f32 %v44, %v44
    %v49 = vmul.f32 %v45, %v45
    %v50 = vadd.f32 %v46, %v47
    %v51 = vadd.f32 %v50, %v48
    %v52 = vadd.f32 %v51, %v49
    %v53 = vrot.slane %v52, 4
    %v54 = vadd.f32 %v52, %v53
    %v55 = vrot.slane %v54, 2
    %v56 = vadd.f32 %v54, %v55
    %v57 = vrot.slane %v56, 1
    %v58 = vadd.f32 %v56, %v57
    %v59 = vmax.f32 %v58, 1e-24
    %v60 = vrsqrt.pop %v59
    %v61 = vmul.f32 %v42, %v60
    %v62 = vmul.f32 %v43, %v60
    %v63 = vmul.f32 %v44, %v60
    %v64 = vmul.f32 %v45, %v60
    %v65 = vld [vmem:[%s2] sm:$0xff]
    %v66 = vld [vmem:[%s2 + $0x8] sm:$0xff]
    %v67 = vld [vmem:[%s2 + $0x10] sm:$0xff]
    %v68 = vld [vmem:[%s2 + $0x18] sm:$0xff]
    %v69 = vld [vmem:[%s2 + $0x20] sm:$0xff]
    %v70 = vld [vmem:[%s2 + $0x28] sm:$0xff]
    %v71 = vld [vmem:[%s2 + $0x30] sm:$0xff]
    %v72 = vld [vmem:[%s2 + $0x38] sm:$0xff]
    %v73 = vld [vmem:[%s3] sm:$0xff]
    %v74 = vld [vmem:[%s3 + $0x8] sm:$0xff]
    %v75 = vld [vmem:[%s3 + $0x10] sm:$0xff]
    %v76 = vld [vmem:[%s3 + $0x18] sm:$0xff]
    %v77 = vld [vmem:[%s3 + $0x20] sm:$0xff]
    %v78 = vld [vmem:[%s3 + $0x28] sm:$0xff]
    %v79 = vld [vmem:[%s3 + $0x30] sm:$0xff]
    %v80 = vld [vmem:[%s3 + $0x38] sm:$0xff]
    %82 = vset.pattern.permute.xlu0 0
    %83 = vperm.xlu0 %82, %v73
    %v84 = vpop.permute.xlu0 %83
    %87 = vset.pattern.permute.xlu0 0
    %88 = vperm.xlu0 %87, %v74
    %v89 = vpop.permute.xlu0 %88
    %92 = vset.pattern.permute.xlu0 0
    %93 = vperm.xlu0 %92, %v75
    %v94 = vpop.permute.xlu0 %93
    %97 = vset.pattern.permute.xlu0 0
    %98 = vperm.xlu0 %97, %v76
    %v99 = vpop.permute.xlu0 %98
    %102 = vset.pattern.permute.xlu0 0
    %103 = vperm.xlu0 %102, %v77
    %v104 = vpop.permute.xlu0 %103
    %107 = vset.pattern.permute.xlu0 0
    %108 = vperm.xlu0 %107, %v78
    %v109 = vpop.permute.xlu0 %108
    %112 = vset.pattern.permute.xlu0 0
    %113 = vperm.xlu0 %112, %v79
    %v114 = vpop.permute.xlu0 %113
    %117 = vset.pattern.permute.xlu0 0
    %118 = vperm.xlu0 %117, %v80
    %v119 = vpop.permute.xlu0 %118
    %vm121 = vcmask 261120
    %v123 = vsel %vm121, %v65, 0
    %v126 = vsel %vm121, %v66, 0
    %v129 = vsel %vm121, %v67, 0
    %v132 = vsel %vm121, %v68, 0
    %v135 = vsel %vm121, %v69, 0
    %v138 = vsel %vm121, %v70, 0
    %v141 = vsel %vm121, %v71, 0
    %v144 = vsel %vm121, %v72, 0
    %146 = vmatprep.subr.mxu0 0.0
    %147 = vmatpush1.msra.mxu0 %v61
    %148 = vmatprep.subr.mxu0 0.0
    %149 = vmatpush1.msra.mxu0 %v62
    %150 = vmatprep.subr.mxu0 0.0
    %151 = vmatpush1.msra.mxu0 %v63
    %152 = vmatprep.subr.mxu0 0.0
    %153 = vmatpush1.msra.mxu0 %v64
    %154 = vmatprep.subr.mxu0 0.0
    %155 = vmatpush1.msra.mxu0 0.0
    %156 = vmatprep.subr.mxu0 0.0
    %157 = vmatpush1.msra.mxu0 0.0
    %158 = vmatprep.subr.mxu0 0.0
    %159 = vmatpush1.msra.mxu0 0.0
    %160 = vmatprep.subr.mxu0 0.0
    %161 = vmatpush1.msra.mxu0 0.0
    %162 = vmatprep.subr.mxu0 0.0
    %163 = vmatpush1.msra.mxu0 0.0
    %164 = vmatprep.subr.mxu0 0.0
    %165 = vmatpush1.msra.mxu0 0.0
    %166 = vmatprep.subr.mxu0 0.0
    %167 = vmatpush1.msra.mxu0 0.0
    %168 = vmatprep.subr.mxu0 0.0
    %169 = vmatpush1.msra.mxu0 0.0
    %170 = vmatprep.subr.mxu0 0.0
    %171 = vmatpush1.msra.mxu0 0.0
    %172 = vmatprep.subr.mxu0 0.0
    %173 = vmatpush1.msra.mxu0 0.0
    %174 = vmatprep.subr.mxu0 0.0
    %175 = vmatpush1.msra.mxu0 0.0
    %176 = vmatprep.subr.mxu0 0.0
    %177 = vmatpush1.msra.mxu0 0.0
    %178 = vmatprep.subr.mxu0 0.0
    %179 = vmatpush1.msra.mxu0 0.0
    %180 = vmatprep.subr.mxu0 0.0
    %181 = vmatpush1.msra.mxu0 0.0
    %182 = vmatprep.subr.mxu0 0.0
    %183 = vmatpush1.msra.mxu0 0.0
    %184 = vmatprep.subr.mxu0 0.0
    %185 = vmatpush1.msra.mxu0 0.0
    %186 = vmatprep.subr.mxu0 0.0
    %187 = vmatpush1.msra.mxu0 0.0
    %188 = vmatprep.subr.mxu0 0.0
    %189 = vmatpush1.msra.mxu0 0.0
    %190 = vmatprep.subr.mxu0 0.0
    %191 = vmatpush1.msra.mxu0 0.0
    %192 = vmatprep.subr.mxu0 0.0
    %193 = vmatpush1.msra.mxu0 0.0
    %194 = vmatprep.subr.mxu0 0.0
    %195 = vmatpush1.msra.mxu0 0.0
    %196 = vmatprep.subr.mxu0 0.0
    %197 = vmatpush1.msra.mxu0 0.0
    %198 = vmatprep.subr.mxu0 0.0
    %199 = vmatpush1.msra.mxu0 0.0
    %200 = vmatprep.subr.mxu0 0.0
    %201 = vmatpush1.msra.mxu0 0.0
    %202 = vmatprep.subr.mxu0 0.0
    %203 = vmatpush1.msra.mxu0 0.0
    %204 = vmatprep.subr.mxu0 0.0
    %205 = vmatpush1.msra.mxu0 0.0
    %206 = vmatprep.subr.mxu0 0.0
    %207 = vmatpush1.msra.mxu0 0.0
    %208 = vmatprep.subr.mxu0 0.0
    %209 = vmatpush1.msra.mxu0 0.0
    %210 = vmatprep.mubr.f32.mxu0 0.0
    %211 = vmatmul.mubr.f32.gmra.mrb[0].mxu0 %v123
    %v212 = vpop.f32.mrb[0].mxu0
    %v213 = vadd.f32 %v84, %v212
    %v214 = vpop.f32.mrb[0].mxu0
    %215 = vmatprep.mubr.f32.mxu0 0.0
    %216 = vmatmul.mubr.f32.gmra.mrb[0].mxu0 %v126
    %v217 = vpop.f32.mrb[0].mxu0
    %v218 = vadd.f32 %v89, %v217
    %v219 = vpop.f32.mrb[0].mxu0
    %220 = vmatprep.mubr.f32.mxu0 0.0
    %221 = vmatmul.mubr.f32.gmra.mrb[0].mxu0 %v129
    %v222 = vpop.f32.mrb[0].mxu0
    %v223 = vadd.f32 %v94, %v222
    %v224 = vpop.f32.mrb[0].mxu0
    %225 = vmatprep.mubr.f32.mxu0 0.0
    %226 = vmatmul.mubr.f32.gmra.mrb[0].mxu0 %v132
    %v227 = vpop.f32.mrb[0].mxu0
    %v228 = vadd.f32 %v99, %v227
    %v229 = vpop.f32.mrb[0].mxu0
    %230 = vmatprep.mubr.f32.mxu0 0.0
    %231 = vmatmul.mubr.f32.gmra.mrb[0].mxu0 %v135
    %v232 = vpop.f32.mrb[0].mxu0
    %v233 = vadd.f32 %v104, %v232
    %v234 = vpop.f32.mrb[0].mxu0
    %235 = vmatprep.mubr.f32.mxu0 0.0
    %236 = vmatmul.mubr.f32.gmra.mrb[0].mxu0 %v138
    %v237 = vpop.f32.mrb[0].mxu0
    %v238 = vadd.f32 %v109, %v237
    %v239 = vpop.f32.mrb[0].mxu0
    %240 = vmatprep.mubr.f32.mxu0 0.0
    %241 = vmatmul.mubr.f32.gmra.mrb[0].mxu0 %v141
    %v242 = vpop.f32.mrb[0].mxu0
    %v243 = vadd.f32 %v114, %v242
    %v244 = vpop.f32.mrb[0].mxu0
    %245 = vmatprep.mubr.f32.mxu0 0.0
    %246 = vmatmul.mubr.f32.gmra.mrb[0].mxu0 %v144
    %v247 = vpop.f32.mrb[0].mxu0
    %v248 = vadd.f32 %v119, %v247
    %v249 = vpop.f32.mrb[0].mxu0
    %250 = vdwg.mxu0
    %v251 = vmax.f32 %v213, 0.0
    %v252 = vmax.f32 %v218, 0.0
    %v253 = vmax.f32 %v223, 0.0
    %v254 = vmax.f32 %v228, 0.0
    %v255 = vmax.f32 %v233, 0.0
    %v256 = vmax.f32 %v238, 0.0
    %v257 = vmax.f32 %v243, 0.0
    %v258 = vmax.f32 %v248, 0.0
    %v259 = vld [vmem:[%s4] sm:$0xff]
    %v260 = vld [vmem:[%s4 + $0x8] sm:$0xff]
    %v261 = vld [vmem:[%s4 + $0x10] sm:$0xff]
    %v262 = vld [vmem:[%s4 + $0x18] sm:$0xff]
    %v263 = vld [vmem:[%s5] sm:$0xff]
    %v264 = vld [vmem:[%s5 + $0x8] sm:$0xff]
    %v265 = vld [vmem:[%s5 + $0x10] sm:$0xff]
    %v266 = vld [vmem:[%s5 + $0x18] sm:$0xff]
    %268 = vset.pattern.permute.xlu0 0
    %269 = vperm.xlu0 %268, %v263
    %v270 = vpop.permute.xlu0 %269
    %273 = vset.pattern.permute.xlu0 0
    %274 = vperm.xlu0 %273, %v264
    %v275 = vpop.permute.xlu0 %274
    %278 = vset.pattern.permute.xlu0 0
    %279 = vperm.xlu0 %278, %v265
    %v280 = vpop.permute.xlu0 %279
    %283 = vset.pattern.permute.xlu0 0
    %284 = vperm.xlu0 %283, %v266
    %v285 = vpop.permute.xlu0 %284
    %vm287 = vcmask 523264
    %v289 = vsel %vm287, %v259, 0
    %v292 = vsel %vm287, %v260, 0
    %v295 = vsel %vm287, %v261, 0
    %v298 = vsel %vm287, %v262, 0
    %300 = vmatprep.subr.mxu0 0.0
    %301 = vmatpush1.msra.mxu0 %v251
    %302 = vmatprep.subr.mxu0 0.0
    %303 = vmatpush1.msra.mxu0 %v252
    %304 = vmatprep.subr.mxu0 0.0
    %305 = vmatpush1.msra.mxu0 %v253
    %306 = vmatprep.subr.mxu0 0.0
    %307 = vmatpush1.msra.mxu0 %v254
    %308 = vmatprep.subr.mxu0 0.0
    %309 = vmatpush1.msra.mxu0 %v255
    %310 = vmatprep.subr.mxu0 0.0
    %311 = vmatpush1.msra.mxu0 %v256
    %312 = vmatprep.subr.mxu0 0.0
    %313 = vmatpush1.msra.mxu0 %v257
    %314 = vmatprep.subr.mxu0 0.0
    %315 = vmatpush1.msra.mxu0 %v258
    %316 = vmatprep.subr.mxu0 0.0
    %317 = vmatpush1.msra.mxu0 0.0
    %318 = vmatprep.subr.mxu0 0.0
    %319 = vmatpush1.msra.mxu0 0.0
    %320 = vmatprep.subr.mxu0 0.0
    %321 = vmatpush1.msra.mxu0 0.0
    %322 = vmatprep.subr.mxu0 0.0
    %323 = vmatpush1.msra.mxu0 0.0
    %324 = vmatprep.subr.mxu0 0.0
    %325 = vmatpush1.msra.mxu0 0.0
    %326 = vmatprep.subr.mxu0 0.0
    %327 = vmatpush1.msra.mxu0 0.0
    %328 = vmatprep.subr.mxu0 0.0
    %329 = vmatpush1.msra.mxu0 0.0
    %330 = vmatprep.subr.mxu0 0.0
    %331 = vmatpush1.msra.mxu0 0.0
    %332 = vmatprep.subr.mxu0 0.0
    %333 = vmatpush1.msra.mxu0 0.0
    %334 = vmatprep.subr.mxu0 0.0
    %335 = vmatpush1.msra.mxu0 0.0
    %336 = vmatprep.subr.mxu0 0.0
    %337 = vmatpush1.msra.mxu0 0.0
    %338 = vmatprep.subr.mxu0 0.0
    %339 = vmatpush1.msra.mxu0 0.0
    %340 = vmatprep.subr.mxu0 0.0
    %341 = vmatpush1.msra.mxu0 0.0
    %342 = vmatprep.subr.mxu0 0.0
    %343 = vmatpush1.msra.mxu0 0.0
    %344 = vmatprep.subr.mxu0 0.0
    %345 = vmatpush1.msra.mxu0 0.0
    %346 = vmatprep.subr.mxu0 0.0
    %347 = vmatpush1.msra.mxu0 0.0
    %348 = vmatprep.subr.mxu0 0.0
    %349 = vmatpush1.msra.mxu0 0.0
    %350 = vmatprep.subr.mxu0 0.0
    %351 = vmatpush1.msra.mxu0 0.0
    %352 = vmatprep.subr.mxu0 0.0
    %353 = vmatpush1.msra.mxu0 0.0
    %354 = vmatprep.subr.mxu0 0.0
    %355 = vmatpush1.msra.mxu0 0.0
    %356 = vmatprep.subr.mxu0 0.0
    %357 = vmatpush1.msra.mxu0 0.0
    %358 = vmatprep.subr.mxu0 0.0
    %359 = vmatpush1.msra.mxu0 0.0
    %360 = vmatprep.subr.mxu0 0.0
    %361 = vmatpush1.msra.mxu0 0.0
    %362 = vmatprep.subr.mxu0 0.0
    %363 = vmatpush1.msra.mxu0 0.0
    %364 = vmatprep.mubr.f32.mxu0 0.0
    %365 = vmatmul.mubr.f32.gmra.mrb[0].mxu0 %v289
    %v366 = vpop.f32.mrb[0].mxu0
    %v367 = vadd.f32 %v270, %v366
    %v368 = vpop.f32.mrb[0].mxu0
    %369 = vmatprep.mubr.f32.mxu0 0.0
    %370 = vmatmul.mubr.f32.gmra.mrb[0].mxu0 %v292
    %v371 = vpop.f32.mrb[0].mxu0
    %v372 = vadd.f32 %v275, %v371
    %v373 = vpop.f32.mrb[0].mxu0
    %374 = vmatprep.mubr.f32.mxu0 0.0
    %375 = vmatmul.mubr.f32.gmra.mrb[0].mxu0 %v295
    %v376 = vpop.f32.mrb[0].mxu0
    %v377 = vadd.f32 %v280, %v376
    %v378 = vpop.f32.mrb[0].mxu0
    %379 = vmatprep.mubr.f32.mxu0 0.0
    %380 = vmatmul.mubr.f32.gmra.mrb[0].mxu0 %v298
    %v381 = vpop.f32.mrb[0].mxu0
    %v382 = vadd.f32 %v285, %v381
    %v383 = vpop.f32.mrb[0].mxu0
    %384 = vdwg.mxu0
    %v385 = vld [vmem:[%s6] sm:$0xff]
    %v386 = vld [vmem:[%s6 + $0x8] sm:$0xff]
    %v387 = vld [vmem:[%s6 + $0x10] sm:$0xff]
    %v388 = vld [vmem:[%s6 + $0x18] sm:$0xff]
    %v389 = vld [vmem:[%s6 + $0x20] sm:$0xff]
    %v390 = vld [vmem:[%s6 + $0x28] sm:$0xff]
    %v391 = vld [vmem:[%s6 + $0x30] sm:$0xff]
    %v392 = vld [vmem:[%s6 + $0x38] sm:$0xff]
    %v393 = vld [vmem:[%s6 + $0x40] sm:$0xff]
    %v394 = vld [vmem:[%s7] sm:$0xff]
    %v395 = vld [vmem:[%s7 + $0x8] sm:$0xff]
    %v396 = vld [vmem:[%s7 + $0x10] sm:$0xff]
    %v397 = vld [vmem:[%s7 + $0x18] sm:$0xff]
    %v398 = vld [vmem:[%s7 + $0x20] sm:$0xff]
    %v399 = vld [vmem:[%s7 + $0x28] sm:$0xff]
    %v400 = vld [vmem:[%s7 + $0x30] sm:$0xff]
    %v401 = vld [vmem:[%s7 + $0x38] sm:$0xff]
    %v402 = vld [vmem:[%s7 + $0x40] sm:$0xff]
    %404 = vset.pattern.permute.xlu0 0
    %405 = vperm.xlu0 %404, %v394
    %v406 = vpop.permute.xlu0 %405
    %409 = vset.pattern.permute.xlu0 0
    %410 = vperm.xlu0 %409, %v395
    %v411 = vpop.permute.xlu0 %410
    %414 = vset.pattern.permute.xlu0 0
    %415 = vperm.xlu0 %414, %v396
    %v416 = vpop.permute.xlu0 %415
    %419 = vset.pattern.permute.xlu0 0
    %420 = vperm.xlu0 %419, %v397
    %v421 = vpop.permute.xlu0 %420
    %424 = vset.pattern.permute.xlu0 0
    %425 = vperm.xlu0 %424, %v398
    %v426 = vpop.permute.xlu0 %425
    %429 = vset.pattern.permute.xlu0 0
    %430 = vperm.xlu0 %429, %v399
    %v431 = vpop.permute.xlu0 %430
    %434 = vset.pattern.permute.xlu0 0
    %435 = vperm.xlu0 %434, %v400
    %v436 = vpop.permute.xlu0 %435
    %439 = vset.pattern.permute.xlu0 0
    %440 = vperm.xlu0 %439, %v401
    %v441 = vpop.permute.xlu0 %440
    %444 = vset.pattern.permute.xlu0 0
    %445 = vperm.xlu0 %444, %v402
    %v446 = vpop.permute.xlu0 %445
    %v449 = vsel %vm121, %v385, 0
    %v452 = vsel %vm121, %v386, 0
    %v455 = vsel %vm121, %v387, 0
    %v458 = vsel %vm121, %v388, 0
    %v461 = vsel %vm121, %v389, 0
    %v464 = vsel %vm121, %v390, 0
    %v467 = vsel %vm121, %v391, 0
    %v470 = vsel %vm121, %v392, 0
    %v473 = vsel %vm121, %v393, 0
    %475 = vmatprep.subr.mxu0 0.0
    %476 = vmatpush1.msra.mxu0 %v367
    %477 = vmatprep.subr.mxu0 0.0
    %478 = vmatpush1.msra.mxu0 %v372
    %479 = vmatprep.subr.mxu0 0.0
    %480 = vmatpush1.msra.mxu0 %v377
    %481 = vmatprep.subr.mxu0 0.0
    %482 = vmatpush1.msra.mxu0 %v382
    %483 = vmatprep.subr.mxu0 0.0
    %484 = vmatpush1.msra.mxu0 0.0
    %485 = vmatprep.subr.mxu0 0.0
    %486 = vmatpush1.msra.mxu0 0.0
    %487 = vmatprep.subr.mxu0 0.0
    %488 = vmatpush1.msra.mxu0 0.0
    %489 = vmatprep.subr.mxu0 0.0
    %490 = vmatpush1.msra.mxu0 0.0
    %491 = vmatprep.subr.mxu0 0.0
    %492 = vmatpush1.msra.mxu0 0.0
    %493 = vmatprep.subr.mxu0 0.0
    %494 = vmatpush1.msra.mxu0 0.0
    %495 = vmatprep.subr.mxu0 0.0
    %496 = vmatpush1.msra.mxu0 0.0
    %497 = vmatprep.subr.mxu0 0.0
    %498 = vmatpush1.msra.mxu0 0.0
    %499 = vmatprep.subr.mxu0 0.0
    %500 = vmatpush1.msra.mxu0 0.0
    %501 = vmatprep.subr.mxu0 0.0
    %502 = vmatpush1.msra.mxu0 0.0
    %503 = vmatprep.subr.mxu0 0.0
    %504 = vmatpush1.msra.mxu0 0.0
    %505 = vmatprep.subr.mxu0 0.0
    %506 = vmatpush1.msra.mxu0 0.0
    %507 = vmatprep.subr.mxu0 0.0
    %508 = vmatpush1.msra.mxu0 0.0
    %509 = vmatprep.subr.mxu0 0.0
    %510 = vmatpush1.msra.mxu0 0.0
    %511 = vmatprep.subr.mxu0 0.0
    %512 = vmatpush1.msra.mxu0 0.0
    %513 = vmatprep.subr.mxu0 0.0
    %514 = vmatpush1.msra.mxu0 0.0
    %515 = vmatprep.subr.mxu0 0.0
    %516 = vmatpush1.msra.mxu0 0.0
    %517 = vmatprep.subr.mxu0 0.0
    %518 = vmatpush1.msra.mxu0 0.0
    %519 = vmatprep.subr.mxu0 0.0
    %520 = vmatpush1.msra.mxu0 0.0
    %521 = vmatprep.subr.mxu0 0.0
    %522 = vmatpush1.msra.mxu0 0.0
    %523 = vmatprep.subr.mxu0 0.0
    %524 = vmatpush1.msra.mxu0 0.0
    %525 = vmatprep.subr.mxu0 0.0
    %526 = vmatpush1.msra.mxu0 0.0
    %527 = vmatprep.subr.mxu0 0.0
    %528 = vmatpush1.msra.mxu0 0.0
    %529 = vmatprep.subr.mxu0 0.0
    %530 = vmatpush1.msra.mxu0 0.0
    %531 = vmatprep.subr.mxu0 0.0
    %532 = vmatpush1.msra.mxu0 0.0
    %533 = vmatprep.subr.mxu0 0.0
    %534 = vmatpush1.msra.mxu0 0.0
    %535 = vmatprep.subr.mxu0 0.0
    %536 = vmatpush1.msra.mxu0 0.0
    %537 = vmatprep.subr.mxu0 0.0
    %538 = vmatpush1.msra.mxu0 0.0
    %539 = vmatprep.mubr.f32.mxu0 0.0
    %540 = vmatmul.mubr.f32.gmra.mrb[0].mxu0 %v449
    %v541 = vpop.f32.mrb[0].mxu0
    %v542 = vadd.f32 %v406, %v541
    %v543 = vpop.f32.mrb[0].mxu0
    %544 = vmatprep.mubr.f32.mxu0 0.0
    %545 = vmatmul.mubr.f32.gmra.mrb[0].mxu0 %v452
    %v546 = vpop.f32.mrb[0].mxu0
    %v547 = vadd.f32 %v411, %v546
    %v548 = vpop.f32.mrb[0].mxu0
    %549 = vmatprep.mubr.f32.mxu0 0.0
    %550 = vmatmul.mubr.f32.gmra.mrb[0].mxu0 %v455
    %v551 = vpop.f32.mrb[0].mxu0
    %v552 = vadd.f32 %v416, %v551
    %v553 = vpop.f32.mrb[0].mxu0
    %554 = vmatprep.mubr.f32.mxu0 0.0
    %555 = vmatmul.mubr.f32.gmra.mrb[0].mxu0 %v458
    %v556 = vpop.f32.mrb[0].mxu0
    %v557 = vadd.f32 %v421, %v556
    %v558 = vpop.f32.mrb[0].mxu0
    %559 = vmatprep.mubr.f32.mxu0 0.0
    %560 = vmatmul.mubr.f32.gmra.mrb[0].mxu0 %v461
    %v561 = vpop.f32.mrb[0].mxu0
    %v562 = vadd.f32 %v426, %v561
    %v563 = vpop.f32.mrb[0].mxu0
    %564 = vmatprep.mubr.f32.mxu0 0.0
    %565 = vmatmul.mubr.f32.gmra.mrb[0].mxu0 %v464
    %v566 = vpop.f32.mrb[0].mxu0
    %v567 = vadd.f32 %v431, %v566
    %v568 = vpop.f32.mrb[0].mxu0
    %569 = vmatprep.mubr.f32.mxu0 0.0
    %570 = vmatmul.mubr.f32.gmra.mrb[0].mxu0 %v467
    %v571 = vpop.f32.mrb[0].mxu0
    %v572 = vadd.f32 %v436, %v571
    %v573 = vpop.f32.mrb[0].mxu0
    %574 = vmatprep.mubr.f32.mxu0 0.0
    %575 = vmatmul.mubr.f32.gmra.mrb[0].mxu0 %v470
    %v576 = vpop.f32.mrb[0].mxu0
    %v577 = vadd.f32 %v441, %v576
    %v578 = vpop.f32.mrb[0].mxu0
    %579 = vmatprep.mubr.f32.mxu0 0.0
    %580 = vmatmul.mubr.f32.gmra.mrb[0].mxu0 %v473
    %v581 = vpop.f32.mrb[0].mxu0
    %v582 = vadd.f32 %v446, %v581
    %v583 = vpop.f32.mrb[0].mxu0
    %584 = vdwg.mxu0
    %v585 = vmax.f32 %v542, 0.0
    %v586 = vmax.f32 %v547, 0.0
    %v587 = vmax.f32 %v552, 0.0
    %v588 = vmax.f32 %v557, 0.0
    %v589 = vmax.f32 %v562, 0.0
    %v590 = vmax.f32 %v567, 0.0
    %v591 = vmax.f32 %v572, 0.0
    %v592 = vmax.f32 %v577, 0.0
    %v593 = vmax.f32 %v582, 0.0
    %v594 = vld [vmem:[%s8] sm:$0xff]
    %v595 = vld [vmem:[%s8 + $0x8] sm:$0xff]
    %v596 = vld [vmem:[%s8 + $0x10] sm:$0xff]
    %v597 = vld [vmem:[%s9] sm:$0xff]
    %v598 = vld [vmem:[%s9 + $0x8] sm:$0xff]
    %v599 = vld [vmem:[%s9 + $0x10] sm:$0xff]
    %601 = vset.pattern.permute.xlu0 0
    %602 = vperm.xlu0 %601, %v597
    %v603 = vpop.permute.xlu0 %602
    %606 = vset.pattern.permute.xlu0 0
    %607 = vperm.xlu0 %606, %v598
    %v608 = vpop.permute.xlu0 %607
    %611 = vset.pattern.permute.xlu0 0
    %612 = vperm.xlu0 %611, %v599
    %v613 = vpop.permute.xlu0 %612
    %vm615 = vcmask 588800
    %v617 = vsel %vm615, %v594, 0
    %v620 = vsel %vm615, %v595, 0
    %v623 = vsel %vm615, %v596, 0
    %625 = vmatprep.subr.mxu0 0.0
    %626 = vmatpush1.msra.mxu0 %v585
    %627 = vmatprep.subr.mxu0 0.0
    %628 = vmatpush1.msra.mxu0 %v586
    %629 = vmatprep.subr.mxu0 0.0
    %630 = vmatpush1.msra.mxu0 %v587
    %631 = vmatprep.subr.mxu0 0.0
    %632 = vmatpush1.msra.mxu0 %v588
    %633 = vmatprep.subr.mxu0 0.0
    %634 = vmatpush1.msra.mxu0 %v589
    %635 = vmatprep.subr.mxu0 0.0
    %636 = vmatpush1.msra.mxu0 %v590
    %637 = vmatprep.subr.mxu0 0.0
    %638 = vmatpush1.msra.mxu0 %v591
    %639 = vmatprep.subr.mxu0 0.0
    %640 = vmatpush1.msra.mxu0 %v592
    %641 = vmatprep.subr.mxu0 0.0
    %642 = vmatpush1.msra.mxu0 %v593
    %643 = vmatprep.subr.mxu0 0.0
    %644 = vmatpush1.msra.mxu0 0.0
    %645 = vmatprep.subr.mxu0 0.0
    %646 = vmatpush1.msra.mxu0 0.0
    %647 = vmatprep.subr.mxu0 0.0
    %648 = vmatpush1.msra.mxu0 0.0
    %649 = vmatprep.subr.mxu0 0.0
    %650 = vmatpush1.msra.mxu0 0.0
    %651 = vmatprep.subr.mxu0 0.0
    %652 = vmatpush1.msra.mxu0 0.0
    %653 = vmatprep.subr.mxu0 0.0
    %654 = vmatpush1.msra.mxu0 0.0
    %655 = vmatprep.subr.mxu0 0.0
    %656 = vmatpush1.msra.mxu0 0.0
    %657 = vmatprep.subr.mxu0 0.0
    %658 = vmatpush1.msra.mxu0 0.0
    %659 = vmatprep.subr.mxu0 0.0
    %660 = vmatpush1.msra.mxu0 0.0
    %661 = vmatprep.subr.mxu0 0.0
    %662 = vmatpush1.msra.mxu0 0.0
    %663 = vmatprep.subr.mxu0 0.0
    %664 = vmatpush1.msra.mxu0 0.0
    %665 = vmatprep.subr.mxu0 0.0
    %666 = vmatpush1.msra.mxu0 0.0
    %667 = vmatprep.subr.mxu0 0.0
    %668 = vmatpush1.msra.mxu0 0.0
    %669 = vmatprep.subr.mxu0 0.0
    %670 = vmatpush1.msra.mxu0 0.0
    %671 = vmatprep.subr.mxu0 0.0
    %672 = vmatpush1.msra.mxu0 0.0
    %673 = vmatprep.subr.mxu0 0.0
    %674 = vmatpush1.msra.mxu0 0.0
    %675 = vmatprep.subr.mxu0 0.0
    %676 = vmatpush1.msra.mxu0 0.0
    %677 = vmatprep.subr.mxu0 0.0
    %678 = vmatpush1.msra.mxu0 0.0
    %679 = vmatprep.subr.mxu0 0.0
    %680 = vmatpush1.msra.mxu0 0.0
    %681 = vmatprep.subr.mxu0 0.0
    %682 = vmatpush1.msra.mxu0 0.0
    %683 = vmatprep.subr.mxu0 0.0
    %684 = vmatpush1.msra.mxu0 0.0
    %685 = vmatprep.subr.mxu0 0.0
    %686 = vmatpush1.msra.mxu0 0.0
    %687 = vmatprep.subr.mxu0 0.0
    %688 = vmatpush1.msra.mxu0 0.0
    %689 = vmatprep.mubr.f32.mxu0 0.0
    %690 = vmatmul.mubr.f32.gmra.mrb[0].mxu0 %v617
    %v691 = vpop.f32.mrb[0].mxu0
    %v692 = vadd.f32 %v603, %v691
    %v693 = vpop.f32.mrb[0].mxu0
    %694 = vmatprep.mubr.f32.mxu0 0.0
    %695 = vmatmul.mubr.f32.gmra.mrb[0].mxu0 %v620
    %v696 = vpop.f32.mrb[0].mxu0
    %v697 = vadd.f32 %v608, %v696
    %v698 = vpop.f32.mrb[0].mxu0
    %699 = vmatprep.mubr.f32.mxu0 0.0
    %700 = vmatmul.mubr.f32.gmra.mrb[0].mxu0 %v623
    %v701 = vpop.f32.mrb[0].mxu0
    %v702 = vadd.f32 %v613, %v701
    %v703 = vpop.f32.mrb[0].mxu0
    %704 = vdwg.mxu0
    %v705 = vmax.f32 %v692, 0.0
    %v706 = vmax.f32 %v697, 0.0
    %v707 = vmax.f32 %v702, 0.0
    %v708 = vld [vmem:[%s10] sm:$0xff]
    %v709 = vld [vmem:[%s11] sm:$0xff]
    %711 = vset.pattern.permute.xlu0 0
    %712 = vperm.xlu0 %711, %v709
    %v713 = vpop.permute.xlu0 %712
    %vm715 = vcmask 195584
    %v717 = vsel %vm715, %v708, 0
    %719 = vmatprep.subr.mxu0 0.0
    %720 = vmatpush1.msra.mxu0 %v705
    %721 = vmatprep.subr.mxu0 0.0
    %722 = vmatpush1.msra.mxu0 %v706
    %723 = vmatprep.subr.mxu0 0.0
    %724 = vmatpush1.msra.mxu0 %v707
    %725 = vmatprep.subr.mxu0 0.0
    %726 = vmatpush1.msra.mxu0 0.0
    %727 = vmatprep.subr.mxu0 0.0
    %728 = vmatpush1.msra.mxu0 0.0
    %729 = vmatprep.subr.mxu0 0.0
    %730 = vmatpush1.msra.mxu0 0.0
    %731 = vmatprep.subr.mxu0 0.0
    %732 = vmatpush1.msra.mxu0 0.0
    %733 = vmatprep.subr.mxu0 0.0
    %734 = vmatpush1.msra.mxu0 0.0
    %735 = vmatprep.subr.mxu0 0.0
    %736 = vmatpush1.msra.mxu0 0.0
    %737 = vmatprep.subr.mxu0 0.0
    %738 = vmatpush1.msra.mxu0 0.0
    %739 = vmatprep.subr.mxu0 0.0
    %740 = vmatpush1.msra.mxu0 0.0
    %741 = vmatprep.subr.mxu0 0.0
    %742 = vmatpush1.msra.mxu0 0.0
    %743 = vmatprep.subr.mxu0 0.0
    %744 = vmatpush1.msra.mxu0 0.0
    %745 = vmatprep.subr.mxu0 0.0
    %746 = vmatpush1.msra.mxu0 0.0
    %747 = vmatprep.subr.mxu0 0.0
    %748 = vmatpush1.msra.mxu0 0.0
    %749 = vmatprep.subr.mxu0 0.0
    %750 = vmatpush1.msra.mxu0 0.0
    %751 = vmatprep.subr.mxu0 0.0
    %752 = vmatpush1.msra.mxu0 0.0
    %753 = vmatprep.subr.mxu0 0.0
    %754 = vmatpush1.msra.mxu0 0.0
    %755 = vmatprep.subr.mxu0 0.0
    %756 = vmatpush1.msra.mxu0 0.0
    %757 = vmatprep.subr.mxu0 0.0
    %758 = vmatpush1.msra.mxu0 0.0
    %759 = vmatprep.subr.mxu0 0.0
    %760 = vmatpush1.msra.mxu0 0.0
    %761 = vmatprep.subr.mxu0 0.0
    %762 = vmatpush1.msra.mxu0 0.0
    %763 = vmatprep.subr.mxu0 0.0
    %764 = vmatpush1.msra.mxu0 0.0
    %765 = vmatprep.subr.mxu0 0.0
    %766 = vmatpush1.msra.mxu0 0.0
    %767 = vmatprep.subr.mxu0 0.0
    %768 = vmatpush1.msra.mxu0 0.0
    %769 = vmatprep.subr.mxu0 0.0
    %770 = vmatpush1.msra.mxu0 0.0
    %771 = vmatprep.subr.mxu0 0.0
    %772 = vmatpush1.msra.mxu0 0.0
    %773 = vmatprep.subr.mxu0 0.0
    %774 = vmatpush1.msra.mxu0 0.0
    %775 = vmatprep.subr.mxu0 0.0
    %776 = vmatpush1.msra.mxu0 0.0
    %777 = vmatprep.subr.mxu0 0.0
    %778 = vmatpush1.msra.mxu0 0.0
    %779 = vmatprep.subr.mxu0 0.0
    %780 = vmatpush1.msra.mxu0 0.0
    %781 = vmatprep.subr.mxu0 0.0
    %782 = vmatpush1.msra.mxu0 0.0
    %783 = vmatprep.mubr.f32.mxu0 0.0
    %784 = vmatmul.mubr.f32.gmra.mrb[0].mxu0 %v717
    %v785 = vpop.f32.mrb[0].mxu0
    %v786 = vadd.f32 %v713, %v785
    %v787 = vpop.f32.mrb[0].mxu0
    %788 = vdwg.mxu0
    %v789 = vmax.f32 %v786, 0.0
    %vm790 = vcmp.gt.f32.partialorder %v786, 20.0
    %v791 = vmin.f32 %v786, 20.0
    %v792 = vmul.f32 %v791, 1.442695
    %v793 = vpow.pop %v792
    %v794 = vadd.f32 %v793, 1.0
    %v795 = vlog2.pop %v794
    %v796 = vmul.f32 %v795, 0.6931472
    %v797 = vmul.f32 -0.5, %v793
    %v798 = vadd.f32 %v797, 1.0
    %v799 = vmul.f32 %v798, %v793
    %v800 = vand.u32 2147483647, %v793
    %vm801 = vcmp.lt.f32.partialorder %v800, 0.0004427343
    %v802 = vsel %vm801, %v799, %v796
    %v803 = vsel %vm790, %v786, %v802
    %v804 = vmul.f32 %v803, 2.5066283
    %v805 = vrcp.pop %v804
    %v806 = vld [vmem:[%s1] sm:$0xff]
    %808 = vset.pattern.permute.xlu0 0
    %809 = vperm.xlu0 %808, %v806
    %v810 = vpop.permute.xlu0 %809
    %v812 = vlaneseq
    %v813 = vshrl.u32 %v812, 7
    %v814 = vsub.s32 1, %v813
    %v815 = vrot.slane %v789, %v814
    %v816 = vsub.f32 %v810, %v815
    %v817 = vlaneseq
    %v818 = vshrl.u32 %v817, 7
    %v819 = vsub.s32 2, %v818
    %v820 = vrot.slane %v805, %v819
    %v821 = vmul.f32 %v816, %v820
    %vm822 = vcmp.lt.f32.partialorder %v821, 0.0
    %v823 = vsel %vm822, -1.0, 1.0
    %v824 = vand.u32 2147483647, %v821
    %v825 = vmul.f32 %v824, 0.3275911
    %v826 = vadd.f32 %v825, 1.0
    %v827 = vrcp.pop %v826
    %v828 = vmul.f32 %v827, 1.0614054
    %v829 = vadd.f32 %v828, -1.4531521
    %v830 = vmul.f32 %v829, %v827
    %v831 = vadd.f32 %v830, 1.4214138
    %v832 = vmul.f32 %v831, %v827
    %v833 = vadd.f32 %v832, -0.28449672
    %v834 = vmul.f32 %v833, %v827
    %v835 = vadd.f32 %v834, 0.2548296
    %v836 = vmul.f32 %v835, %v827
    %v837 = vsub.f32 0.0, %v824
    %v838 = vmul.f32 %v837, %v824
    %v839 = vmul.f32 %v838, 1.442695
    %v840 = vpow.pop %v839
    %v841 = vmul.f32 %v836, %v840
    %v842 = vsub.f32 1.0, %v841
    %v843 = vmul.f32 %v823, %v842
    %v844 = vadd.f32 %v843, 1.0
    %v845 = vlaneseq
    %v846 = vshrl.u32 %v845, 7
    %v847 = vsub.s32 0, %v846
    %v848 = vrot.slane %v789, %v847
    %v849 = vmul.f32 %v848, %v844
    %850 = vst [vmem:[#allocation2] sm:$0xff] %v849
    // Predicated region
    $region50: #{tpu_custom_call.1} parent=1 // pred_check
      _
    $region51: #{tpu_custom_call.1} parent=1 // pred_check_branch
      %852 = sbr.rel (0) target = $region53
    $region52: #{tpu_custom_call.1} parent=1 // pred_region
      %s854 = ssub.s32 128, 128
      %855 = vsyncadd [#allocation3], %s854
      %s857 = sshll.u32 [#allocation2], 4
      %s858 = int_to_ptr.vmem [resolvable:$true] %s857
      %860 = dma.vmem_to_hbm [thread:$0]  %s858, 128, %s12, [#allocation3]
    $region53: #{tpu_custom_call.1} parent=1 // pred_fallthru
      _
    // Predicated region
    $region54: #{tpu_custom_call.1} parent=1 // pred_check
      _
    $region55: #{tpu_custom_call.1} parent=1 // pred_check_branch
      %862 = sbr.rel (0) target = $region57
    $region56: #{tpu_custom_call.1} parent=1 // pred_region
      %863 = dma.done [#allocation3], 128
    $region57: #{tpu_custom_call.1} parent=1 // pred_fallthru
      _
    %864 = vsyncpa [#allocation3], 1

</llo_original>
